<compile_context>
chip_gen: v5e
topology: v5e:2x2
jax: 0.10.0
libtpu: 0.0.40
codegen_flags: <defaults>
</compile_context>

<pallas_src>
import jax
import jax.numpy as jnp
from jax.experimental import pallas as pl
from jax.experimental.pallas import tpu as pltpu


def classifier_kernel(x_ref, w_ref, o_ref):
    # In-kernel bf16 cast feeding the MXU; f32 accumulation + f32 softmax.
    x = x_ref[...].astype(jnp.bfloat16)
    w = w_ref[...].astype(jnp.bfloat16)
    logits = jnp.dot(x, w, preferred_element_type=jnp.float32)
    # Numerically stable softmax over the class (last) axis == dim=1 for 2-D.
    m = jnp.max(logits, axis=-1, keepdims=True)
    e = jnp.exp(logits - m)
    denom = jnp.sum(e, axis=-1, keepdims=True)
    o_ref[...] = (e / denom).astype(o_ref.dtype)  # exact normalization


def _round_up(x, m):
    return ((x + m - 1) // m) * m


def _vmem_capacity_bytes():
    """Per-core VMEM capacity; conservative (v7x-sized) fallback if query fails."""
    try:
        return int(pltpu.get_tpu_info().vmem_capacity_bytes)
    except Exception:
        return 64 * 1024 * 1024


def _pick_batch_tile(batch, feat, ncls, budget_bytes):
    """Largest multiple-of-16 batch tile whose VMEM working set fits the budget."""
    feat_p = _round_up(feat, 8)      # internal sublane padding (f32)
    cls_p = _round_up(ncls, 128)     # internal lane padding of w / out columns
    w_bytes = 2 * feat_p * cls_p * 4  # resident f32 weight (count 2x for safety)
    if w_bytes > budget_bytes // 2:
        # TODO(synk): implement class-axis / K-reduction grid tiling here.
        raise ValueError(
            f"Classifier weight ({w_bytes} B incl. buffering) too large to stay "
            f"VMEM-resident within budget ({budget_bytes} B); class/K tiling "
            f"not implemented.")
    per_row = 2 * (feat_p * 4 + cls_p * 4)  # double-buffered f32 x + f32 out rows
    tb = (budget_bytes - w_bytes) // max(per_row, 1)
    tb = max(16, min(2048, int(tb)))
    tb = (tb // 16) * 16
    tb = min(tb, _round_up(batch, 16))
    return tb, w_bytes, feat_p, cls_p


def classifier_forward(x, w, *, block_b=None):
    """x: [B, F] float32, w: [F, C] float32 -> softmax(x @ w, axis=1), f32 [B, C]."""
    B, F = x.shape
    Fw, C = w.shape
    assert F == Fw, "weight must be [fea_dim, cls_dim]"

    vmem_cap = _vmem_capacity_bytes()
    tile_budget = vmem_cap // 2                 # ~64 MiB v5e/v6e, ~32 MiB v7x
    TB, w_bytes, feat_p, cls_p = _pick_batch_tile(B, F, C, tile_budget)
    if block_b is not None:
        TB = min(max(16, (block_b // 16) * 16), _round_up(B, 16))

    # Exact working set: resident weight + double-buffered x/out tiles + slack,
    # capped at ~3/4 of per-core VMEM (headroom for compiler scratch).
    working = w_bytes + 2 * TB * feat_p * 4 + 2 * TB * cls_p * 4 + 2 * 1024 * 1024
    vmem_limit = int(min(vmem_cap * 3 // 4, max(working, 4 * 1024 * 1024)))

    return pl.pallas_call(
        classifier_kernel,
        out_shape=jax.ShapeDtypeStruct((B, C), jnp.float32),
        grid_spec=pl.GridSpec(
            grid=(pl.cdiv(B, TB),),
            in_specs=[
                # x: one batch tile per grid step (pipelined / double-buffered);
                # ragged last block handled by Pallas output-store masking.
                pl.BlockSpec((TB, F), lambda i: (i, 0)),
                # w: constant block index -> stays VMEM-resident across steps.
                pl.BlockSpec((F, C), lambda i: (0, 0)),
            ],
            out_specs=pl.BlockSpec((TB, C), lambda i: (i, 0)),
        ),
        compiler_params=pltpu.CompilerParams(
            dimension_semantics=("parallel",),
            vmem_limit_bytes=vmem_limit,
        ),
    )(x, w)


if __name__ == "__main__":
    # Small shapes consistent with the module: batch=64, fea_dim=32, cls_dim=16.
    B, FEA_DIM, CLS_DIM = 64, 32, 16

    key = jax.random.PRNGKey(0)
    kx, kw = jax.random.split(key)

    features = jax.random.normal(kx, (B, FEA_DIM), dtype=jnp.float32)

    # Deterministic Linear weight (PyTorch default U(-1/sqrt(fea_dim), +1/sqrt(fea_dim))),
    # stored transposed as [F, C] for the kernel's x @ w convention. bias=False.
    bound = 1.0 / (FEA_DIM ** 0.5)
    w_fc = jax.random.uniform(
        kw, (FEA_DIM, CLS_DIM), dtype=jnp.float32, minval=-bound, maxval=bound
    )

    # Small block_b so the demo actually exercises the batch grid (4 steps).
    out = classifier_forward(features, w_fc, block_b=16)
    out = jax.block_until_ready(out)

    # Cross-check against a plain-JAX f32 reference of the PyTorch forward.
    # (bf16 MXU inputs -> slightly loosened probability tolerance.)
    ref = jax.nn.softmax(features @ w_fc, axis=1)
    assert out.shape == (B, CLS_DIM)
    assert jnp.allclose(out, ref, atol=1e-2, rtol=1e-2)
    assert jnp.allclose(jnp.sum(out, axis=1), 1.0, atol=1e-4)  # exact normalization

    print("KERNEL_OK")
</pallas_src>

<mosaic_0001>
module attributes {stable_mosaic.version = 11 : i64} {
  func.func @classifier_kernel(%arg0: i32, %arg1: memref<16x32xf32, #tpu.memory_space<vmem>>, %arg2: memref<32x16xf32, #tpu.memory_space<vmem>>, %arg3: memref<16x16xf32, #tpu.memory_space<vmem>>) attributes {dimension_semantics = [#tpu.dimension_semantics<parallel>], iteration_bounds = array<i64: 4>, scalar_prefetch = 0 : i64, scratch_operands = 0 : i64, tpu.core_type = #tpu.core_type<tc>, window_params = [{transform_indices = @transform_0, window_bounds = array<i64: 16, 32>}, {pipeline_mode = #tpu.pipeline_mode<synchronous>, transform_indices = @transform_1, window_bounds = array<i64: 32, 16>}, {transform_indices = @transform_2, window_bounds = array<i64: 16, 16>}]} {
    %c0 = arith.constant 0 : index
    %c0_0 = arith.constant 0 : index
    %0 = vector.load %arg1[%c0, %c0_0] : memref<16x32xf32, #tpu.memory_space<vmem>>, vector<16x32xf32>
    %1 = arith.truncf %0 : vector<16x32xf32> to vector<16x32xbf16>
    %c0_1 = arith.constant 0 : index
    %c0_2 = arith.constant 0 : index
    %2 = vector.load %arg2[%c0_1, %c0_2] : memref<32x16xf32, #tpu.memory_space<vmem>>, vector<32x16xf32>
    %3 = arith.truncf %2 : vector<32x16xf32> to vector<32x16xbf16>
    %cst = arith.constant dense<0.000000e+00> : vector<16x16xf32>
    %4 = tpu.matmul %1, %3, %cst {dimension_numbers = #tpu.dot_dimension_numbers<[1], [0], [0], [1], [0, 0, 1, 1], [], []>} : vector<16x32xbf16>, vector<32x16xbf16>, vector<16x16xf32> -> vector<16x16xf32>
    %cst_3 = arith.constant dense<0xFF800000> : vector<16xf32>
    %5 = vector.multi_reduction <maximumf>, %4, %cst_3 [1] : vector<16x16xf32> to vector<16xf32>
    %6 = vector.shape_cast %5 : vector<16xf32> to vector<16x1xf32>
    %7 = vector.broadcast %6 : vector<16x1xf32> to vector<16x16xf32>
    %8 = arith.subf %4, %7 : vector<16x16xf32>
    %9 = math.exp %8 : vector<16x16xf32>
    %cst_4 = arith.constant dense<0.000000e+00> : vector<16xf32>
    %10 = vector.multi_reduction <add>, %9, %cst_4 [1] : vector<16x16xf32> to vector<16xf32>
    %11 = vector.shape_cast %10 : vector<16xf32> to vector<16x1xf32>
    %12 = vector.broadcast %11 : vector<16x1xf32> to vector<16x16xf32>
    %13 = arith.divf %9, %12 : vector<16x16xf32>
    %c0_5 = arith.constant 0 : index
    %c0_6 = arith.constant 0 : index
    %14 = vector.load %arg3[%c0_5, %c0_6] : memref<16x16xf32, #tpu.memory_space<vmem>>, vector<16x16xf32>
    tpu.vector_store %arg3[%c0_5, %c0_6], %13 {strides = array<i32>} : memref<16x16xf32, #tpu.memory_space<vmem>>, vector<16x16xf32>,
    return
  }
  func.func @transform_0(%arg0: i32) -> (i32, i32) {
    %c0_i32 = arith.constant 0 : i32
    %c0_i32_0 = arith.constant 0 : i32
    return %arg0, %c0_i32 : i32, i32
  }
  func.func @transform_1(%arg0: i32) -> (i32, i32) {
    %c0_i32 = arith.constant 0 : i32
    %c0_i32_0 = arith.constant 0 : i32
    %c0_i32_1 = arith.constant 0 : i32
    return %c0_i32, %c0_i32_0 : i32, i32
  }
  func.func @transform_2(%arg0: i32) -> (i32, i32) {
    %c0_i32 = arith.constant 0 : i32
    %c0_i32_0 = arith.constant 0 : i32
    return %arg0, %c0_i32 : i32, i32
  }
}

</mosaic_0001>

<llo_original>
// kernel: tpu_custom_call.1
$region0: #{tpu_custom_call.1}
  #allocation0 [shape = 'u32[]', space=smem, size = 0x4, offset = 0x4, fixed_abs, tag = 'smem constant byte address 0x4 - core index']
  #allocation1 [shape = 'u32[72,128]{1,0:T(1,128)}', space=vmem, size = 0x9000, scoped, tag = 'internal scratch']
  %s0 = inlined_call_operand.vmem [shape: f32[64,32], index: 0, kind: input, shape index: {}]
  %s1 = inlined_call_operand.vmem [shape: f32[32,16], index: 1, kind: input, shape index: {}]
  %s2 = inlined_call_operand.vmem [shape: f32[64,16], index: 2, kind: output, shape index: {}]
  %s3 = sld [smem:[#allocation0]]
  $region41: #{tpu_custom_call.1} parent=0
    _
  %s5 = ssub.s32 1, %s3
  %s6 = scalar_select 0, %s5, %s3
  loop: start=0, step=1, limit=6
  $region2: #{tpu_custom_call.1} parent=0 // loop_pre_header
    _
  $region3: #{tpu_custom_call.1} parent=0 // loop_header
    %s8 = sphi 0, %s12
    %p9 = scmp.ge.s32.totalorder %s8, 6
    %s18 = sphi 0, %s20
    %s21 = sphi 0, %s18
    %s22 = sphi 0, %s21
    %s38 = sphi 0, %s22
    %s42 = sphi 0, %s42
    %s44 = sphi 0, %s42
    %s45 = sphi 0, %s44
    %s59 = sphi 0, %s45
    %s65 = sphi 0, %s67
    %s68 = sphi 0, %s65
    %s69 = sphi 0, %s68
    %s85 = sphi 0, %s69
  $region4: #{tpu_custom_call.1} parent=0 // loop_header_branch
    %11 = sbr.rel (%p9) target = $region8
  $region5: #{tpu_custom_call.1} parent=0 // loop_body
    %s13 = ssub.s32 %s8, 1
    %s14 = ssub.s32 %s8, 2
    %s15 = sadd.s32 %s8, 1
    %s16 = ssub.s32 %s8, %s15
    %p17 = scmp.eq.s32.totalorder %s16, 0
    %s19 = sadd.s32 %s18, 1
    %s20 = scalar_select %p17, %s18, %s19
    %p23 = pneg %p17
    %p24 = scmp.eq.s32.totalorder %s8, 3
    %p25 = por %p23, %p24
    %p26 = scmp.ne.s32.totalorder %s18, %s21
    %p27 = scmp.eq.s32.totalorder %s8, 0
    %p28 = por %p26, %p27
    %p29 = scmp.ne.s32.totalorder %s18, %s21
    %p30 = scmp.eq.s32.totalorder %s13, 3
    %p31 = por %p29, %p30
    %p32 = scmp.ne.s32.totalorder %s21, %s22
    %p33 = scmp.eq.s32.totalorder %s13, 0
    %p34 = por %p32, %p33
    %p35 = scmp.ne.s32.totalorder %s21, %s22
    %p36 = scmp.eq.s32.totalorder %s14, 3
    %p37 = por %p35, %p36
    %p39 = scmp.ne.s32.totalorder %s22, %s38
    %p40 = scmp.eq.s32.totalorder %s14, 0
    %p41 = por %p39, %p40
    %s43 = sadd.s32 %s42, 1
    %p46 = scmp.eq.s32.totalorder %s8, 3
    %p47 = scmp.ne.s32.totalorder %s42, %s44
    %p48 = scmp.eq.s32.totalorder %s8, 0
    %p49 = por %p47, %p48
    %p50 = scmp.ne.s32.totalorder %s42, %s44
    %p51 = scmp.eq.s32.totalorder %s13, 3
    %p52 = por %p50, %p51
    %p53 = scmp.ne.s32.totalorder %s44, %s45
    %p54 = scmp.eq.s32.totalorder %s13, 0
    %p55 = por %p53, %p54
    %p56 = scmp.ne.s32.totalorder %s44, %s45
    %p57 = scmp.eq.s32.totalorder %s14, 3
    %p58 = por %p56, %p57
    %p60 = scmp.ne.s32.totalorder %s45, %s59
    %p61 = scmp.eq.s32.totalorder %s14, 0
    %p62 = por %p60, %p61
    %s63 = ssub.s32 %s8, %s15
    %p64 = scmp.eq.s32.totalorder %s63, 0
    %s66 = sadd.s32 %s65, 1
    %s67 = scalar_select %p64, %s65, %s66
    %p70 = pneg %p64
    %p71 = scmp.eq.s32.totalorder %s8, 3
    %p72 = por %p70, %p71
    %p73 = scmp.ne.s32.totalorder %s65, %s68
    %p74 = scmp.eq.s32.totalorder %s8, 0
    %p75 = por %p73, %p74
    %p76 = scmp.ne.s32.totalorder %s65, %s68
    %p77 = scmp.eq.s32.totalorder %s13, 3
    %p78 = por %p76, %p77
    %p79 = scmp.ne.s32.totalorder %s68, %s69
    %p80 = scmp.eq.s32.totalorder %s13, 0
    %p81 = por %p79, %p80
    %p82 = scmp.ne.s32.totalorder %s68, %s69
    %p83 = scmp.eq.s32.totalorder %s14, 3
    %p84 = por %p82, %p83
    %p86 = scmp.ne.s32.totalorder %s69, %s85
    %p87 = scmp.eq.s32.totalorder %s14, 0
    %p88 = por %p86, %p87
    %p89 = scmp.le.s32.totalorder 1, %s8
    %p90 = scmp.lt.s32.totalorder %s8, 5
    %p91 = pnand %p89, %p90
    %p92 = pneg %p91
    // Predicated region
    $region9: #{tpu_custom_call.1} parent=5 // pred_check
      _
    $region10: #{tpu_custom_call.1} parent=5 // pred_check_branch
      %94 = sbr.rel (%p91) target = $region12
    $region11: #{tpu_custom_call.1} parent=5 // pred_region
      %s95 = ssub.s32 %s8, 1
      // Predicated region
      $region13: #{tpu_custom_call.1} parent=11 // pred_check
        %p96 = pneg %p55
      $region14: #{tpu_custom_call.1} parent=11 // pred_check_branch
        %98 = sbr.rel (%p96) target = $region16
      $region15: #{tpu_custom_call.1} parent=11 // pred_region
        _
      $region16: #{tpu_custom_call.1} parent=11 // pred_fallthru
        _
    $region12: #{tpu_custom_call.1} parent=5 // pred_fallthru
      _
    %p99 = scmp.lt.s32.totalorder %s8, 4
    // Predicated region
    $region17: #{tpu_custom_call.1} parent=5 // pred_check
      %p100 = pneg %p99
    $region18: #{tpu_custom_call.1} parent=5 // pred_check_branch
      %102 = sbr.rel (%p100) target = $region20
    $region19: #{tpu_custom_call.1} parent=5 // pred_region
      // Predicated region
      $region21: #{tpu_custom_call.1} parent=19 // pred_check
        %p103 = pneg %p28
      $region22: #{tpu_custom_call.1} parent=19 // pred_check_branch
        %105 = sbr.rel (%p103) target = $region24
      $region23: #{tpu_custom_call.1} parent=19 // pred_region
        %s106 = smul.u32 2, %s8
        %p107 = scmp.lt.s32.totalorder %s106, 7
        %s108 = scalar_select %p107, %s106, 7
        %s109 = smul.addr %s108, 8
        %s110 = scalar_lea.vmem %s0, %s109
        %s111 = smul.u32 2, %s8
      $region24: #{tpu_custom_call.1} parent=19 // pred_fallthru
        _
    $region20: #{tpu_custom_call.1} parent=5 // pred_fallthru
      _
    %p112 = scmp.le.s32.totalorder 1, %s8
    %p113 = scmp.lt.s32.totalorder %s8, 5
    %p114 = pnand %p112, %p113
    %p115 = pneg %p114
    // Predicated region
    $region25: #{tpu_custom_call.1} parent=5 // pred_check
      _
    $region26: #{tpu_custom_call.1} parent=5 // pred_check_branch
      %117 = sbr.rel (%p114) target = $region28
    $region27: #{tpu_custom_call.1} parent=5 // pred_region
      %s118 = ssub.s32 %s8, 1
      %s119 = smul.u32 2, %s13
      %p120 = scmp.lt.s32.totalorder %s119, 7
      %s121 = scalar_select %p120, %s119, 7
      %s122 = smul.addr %s121, 8
      %s123 = scalar_lea.vmem %s0, %s122
      %p124 = pneg %p34
      %p125 = pneg %p31
      %p126 = pneg %p55
      %p127 = pneg %p52
      %p128 = pneg %p81
      %p129 = pneg %p78
      %s130 = smul.u32 2, %s13
      %p131 = scmp.lt.s32.totalorder %s130, 7
      %s132 = scalar_select %p131, %s130, 7
      %s133 = smul.addr %s132, 8
      %s134 = scalar_lea.vmem %s2, %s133
      %s135 = smul.u32 2, %s13
      %p136 = scmp.lt.s32.totalorder %s135, 7
      %s137 = scalar_select %p136, %s135, 7
      %s138 = smul.addr %s137, 8
      %s139 = scalar_lea.vmem %s0, %s138
      %s140 = smul.u32 2, %s13
      %s141 = smul.u32 2, %s13
      %p142 = scmp.lt.s32.totalorder %s141, 7
      %s143 = scalar_select %p142, %s141, 7
      %s144 = smul.addr %s143, 8
      %s145 = scalar_lea.vmem %s2, %s144
      %s146 = smul.u32 2, %s13
      %v148 = vld [vmem:[%s139] sm:$0xff]
      %v149 = vld [vmem:[%s139 + $0x8] sm:$0xff]
      %v150 = vpack.c.bf16 %v149, %v148
      %v151 = vld [vmem:[%s1] sm:$0xff]
      %v152 = vld [vmem:[%s1 + $0x8] sm:$0xff]
      %v153 = vld [vmem:[%s1 + $0x10] sm:$0xff]
      %v154 = vld [vmem:[%s1 + $0x18] sm:$0xff]
      %v155 = vpack.c.bf16 %v152, %v151
      %v156 = vpack.c.bf16 %v154, %v153
      %vm157 = vcmask 261120
      %v159 = vsel %vm157, %v150, 0
      %161 = vmatpush.bf16.msra.mxu0 0
      %162 = vmatpush.bf16.msra.mxu0 0
      %163 = vmatpush.bf16.msra.mxu0 0
      %164 = vmatpush.bf16.msra.mxu0 0
      %165 = vmatpush.bf16.msra.mxu0 0
      %166 = vmatpush.bf16.msra.mxu0 0
      %167 = vmatpush.bf16.msra.mxu0 %v156
      %168 = vmatpush.bf16.msra.mxu0 %v155
      %169 = vmatmul.bf16.gmra.mxu0 %v159
      %v170 = vpop.f32.mrf.mxu0
      %v171 = vadd.f32 0.0, %v170
      %v172 = vpop.f32.mrf.mxu0
      %v173 = vadd.f32 0.0, %v172
      %174 = vdwg.mxu0
      %vm175 = vcmask 130048
      %v176 = vsel %vm175, %v171, -inf
      %177 = vmax.xlane.f32.xlu0 %v176
      %v178 = vpop.xlane.xlu0 %177
      %v179 = vsel %vm175, %v173, -inf
      %180 = vmax.xlane.f32.xlu0 %v179
      %v181 = vpop.xlane.xlu0 %180
      %v182 = vsub.f32 %v171, %v178
      %v183 = vsub.f32 %v173, %v181
      %v184 = vmul.f32 %v182, 1.442695
      %v185 = vpow.pop %v184
      %v186 = vmul.f32 %v183, 1.442695
      %v187 = vpow.pop %v186
      %v188 = vsel %vm175, %v185, 0.0
      %189 = vadd.xlane.f32.xlu0 %v188
      %v190 = vpop.xlane.xlu0 %189
      %v191 = vsel %vm175, %v187, 0.0
      %192 = vadd.xlane.f32.xlu0 %v191
      %v193 = vpop.xlane.xlu0 %192
      %v194 = vrcp.pop %v190
      %v195 = vmul.f32 %v190, %v194
      %v196 = vsub.f32 1.0, %v195
      %v197 = vmul.f32 %v194, %v196
      %v198 = vadd.f32 %v194, %v197
      %vm199 = vweird.f32 %v190
      %vm200 = vweird.f32 %v194
      %vm201 = vmor %vm199, %vm200
      %v202 = vsel %vm201, %v194, %v198
      %v203 = vand.u32 2147483647, %v190
      %vm204 = vcmp.eq.f32.partialorder %v203, 8.507059e+37
      %v205 = vand.u32 %v190, 2147483648
      %v206 = vor.u32 1.1754944e-38, %v205
      %v207 = vsel %vm204, %v206, %v202
      %v208 = vmul.f32 %v185, %v207
      %v209 = vrcp.pop %v193
      %v210 = vmul.f32 %v193, %v209
      %v211 = vsub.f32 1.0, %v210
      %v212 = vmul.f32 %v209, %v211
      %v213 = vadd.f32 %v209, %v212
      %vm214 = vweird.f32 %v193
      %vm215 = vweird.f32 %v209
      %vm216 = vmor %vm214, %vm215
      %v217 = vsel %vm216, %v209, %v213
      %v218 = vand.u32 2147483647, %v193
      %vm219 = vcmp.eq.f32.partialorder %v218, 8.507059e+37
      %v220 = vand.u32 %v193, 2147483648
      %v221 = vor.u32 1.1754944e-38, %v220
      %v222 = vsel %vm219, %v221, %v217
      %v223 = vmul.f32 %v187, %v222
      %224 = vst.msk [vmem:[%s145] sm:$0xff] %vm175, %v208
      %225 = vst.msk [vmem:[%s145 + $0x8] sm:$0xff] %vm175, %v223
      %s226 = smul.u32 2, %s13
      %p227 = scmp.lt.s32.totalorder %s226, 7
      %s228 = scalar_select %p227, %s226, 7
      %s229 = smul.addr %s228, 8
      %s230 = scalar_lea.vmem %s2, %s229
      // Predicated region
      $region29: #{tpu_custom_call.1} parent=27 // pred_check
        %p231 = pneg %p78
      $region30: #{tpu_custom_call.1} parent=27 // pred_check_branch
        %233 = sbr.rel (%p231) target = $region32
      $region31: #{tpu_custom_call.1} parent=27 // pred_region
        %s234 = smul.u32 2, %s13
      $region32: #{tpu_custom_call.1} parent=27 // pred_fallthru
        _
    $region28: #{tpu_custom_call.1} parent=5 // pred_fallthru
      _
    %p235 = scmp.le.s32.totalorder 2, %s8
    // Predicated region
    $region33: #{tpu_custom_call.1} parent=5 // pred_check
      %p236 = pneg %p235
    $region34: #{tpu_custom_call.1} parent=5 // pred_check_branch
      %238 = sbr.rel (%p236) target = $region36
    $region35: #{tpu_custom_call.1} parent=5 // pred_region
      %s239 = ssub.s32 %s8, 2
      // Predicated region
      $region37: #{tpu_custom_call.1} parent=35 // pred_check
        %p240 = pneg %p84
      $region38: #{tpu_custom_call.1} parent=35 // pred_check_branch
        %242 = sbr.rel (%p240) target = $region40
      $region39: #{tpu_custom_call.1} parent=35 // pred_region
        %s243 = smul.u32 2, %s14
        %p244 = scmp.lt.s32.totalorder %s243, 7
        %s245 = scalar_select %p244, %s243, 7
        %s246 = smul.addr %s245, 8
        %s247 = scalar_lea.vmem %s2, %s246
      $region40: #{tpu_custom_call.1} parent=35 // pred_fallthru
        _
    $region36: #{tpu_custom_call.1} parent=5 // pred_fallthru
      _
  $region6: #{tpu_custom_call.1} parent=0 // loop_footer
    %s12 = sadd.s32 1, %s8
  $region7: #{tpu_custom_call.1} parent=0 // loop_footer_branch
    %7 = sbr.rel target = $region3
  $region8: #{tpu_custom_call.1} parent=0 // loop_exit
    _

</llo_original>
